<compile_context>
chip_gen: v5e
topology: v5e:2x2
jax: 0.10.0
libtpu: 0.0.40
codegen_flags: <defaults>
</compile_context>

<pallas_src>
import functools

import jax
import jax.numpy as jnp
from jax import lax
from jax.experimental import pallas as pl
from jax.experimental.pallas import tpu as pltpu


# ----------------------------- Pallas fused conv kernel -----------------------------

def _conv_fused_kernel(x_ref, w_ref, scale_ref, shift_ref, *rest,
                       KH, Wo, M, relu, has_res):
    """Fused conv (kh-decomposed matmul) + BN scale/shift + optional residual + ReLU.

    x_ref     : (M + (KH-1)*Wo, Kd)  bf16   flat activation slab (batch folded into rows)
    w_ref     : (KH, Kd, tn)         bf16   per-kernel-row weight matrices
    scale_ref : (1, tn)              f32
    shift_ref : (1, tn)              f32
    res_ref   : (M, tn)              bf16   (optional residual, added before ReLU)
    o_ref     : (M, tn)              output
    """
    if has_res:
        res_ref, o_ref = rest
    else:
        (o_ref,) = rest

    # accumulator initialized by the first matmul (no zero-fill pass)
    acc = jnp.dot(x_ref[0:M, :], w_ref[0], preferred_element_type=jnp.float32)
    for kh in range(1, KH):                       # short, fully unrolled (KH <= 3 here)
        acc = acc + jnp.dot(x_ref[kh * Wo:kh * Wo + M, :], w_ref[kh],
                            preferred_element_type=jnp.float32)

    y = acc * scale_ref[...] + shift_ref[...]          # BN epilogue (f32)
    if has_res:
        y = y + res_ref[...].astype(jnp.float32)       # fused residual add
    if relu:
        y = jnp.maximum(y, 0.0)
    o_ref[...] = y.astype(o_ref.dtype)


def _fused_conv_pallas(xw, wmat, scale, shift, residual, *, relu, M, Wo, out_dtype):
    """xw: (M + (KH-1)*Wo, Kd) bf16, wmat: (KH, Kd, Cout) bf16 -> (M, Cout)."""
    R_total, Kd = xw.shape
    KH, Kd2, Cout = wmat.shape
    assert Kd == Kd2
    assert R_total == M + (KH - 1) * Wo

    if Cout <= 256:
        tn = Cout
    elif Cout % 256 == 0:
        tn = 256
    elif Cout % 128 == 0:
        tn = 128
    else:
        tn = Cout
    grid = (Cout // tn,)

    scale2 = scale.reshape(1, Cout).astype(jnp.float32)
    shift2 = shift.reshape(1, Cout).astype(jnp.float32)

    kernel = functools.partial(_conv_fused_kernel, KH=KH, Wo=Wo, M=M,
                               relu=relu, has_res=residual is not None)

    in_specs = [
        pl.BlockSpec((R_total, Kd), lambda j: (0, 0)),       # x resident across Cout tiles
        pl.BlockSpec((KH, Kd, tn), lambda j: (0, 0, j)),
        pl.BlockSpec((1, tn), lambda j: (0, j)),
        pl.BlockSpec((1, tn), lambda j: (0, j)),
    ]
    args = [xw, wmat, scale2, shift2]
    if residual is not None:
        in_specs.append(pl.BlockSpec((M, tn), lambda j: (0, j)))
        args.append(residual)

    # VMEM budget sized from the actual operands (review item); safe on v5e/v6e/v7x.
    out_bytes = M * tn * jnp.dtype(out_dtype).itemsize
    in_bytes = (R_total * Kd * 2 + KH * Kd * tn * 2 + 2 * tn * 4 * 2
                + (M * tn * 2 if residual is not None else 0))
    vmem_limit = int(min(64 * 1024 * 1024,
                         max(32 * 1024 * 1024, 2 * (in_bytes + out_bytes) + (4 << 20))))

    # TODO(synk): for very large H*W on v7x (64 MiB VMEM) add an output-row grid axis
    # with halo (pl.Element offsets) instead of the whole-slab block.
    return pl.pallas_call(
        kernel,
        out_shape=jax.ShapeDtypeStruct((M, Cout), out_dtype),
        grid_spec=pltpu.PrefetchScalarGridSpec(
            num_scalar_prefetch=0,
            grid=grid,
            in_specs=in_specs,
            out_specs=pl.BlockSpec((M, tn), lambda j: (0, j))),
        compiler_params=pltpu.CompilerParams(
            dimension_semantics=("parallel",),
            vmem_limit_bytes=vmem_limit),
    )(*args)


# --------------------------- conv layer wrappers (thin JAX glue) -------------------------

def conv_bn_act(x, prep, bn=None, residual=None, relu=False, out_dtype=jnp.bfloat16):
    """Conv2d (any stride) + folded BN + optional residual + optional ReLU.  x: NHWC.

    Stride-s convs are rewritten as stride-1 convs on a space-to-depth transform of the
    input.  Small-K layers use a full KHxKW im2col (single matmul); others use a
    KW-only im2col and KH row-shifted matmuls inside the kernel.  Batch is folded into
    the matmul rows (junk halo rows between batch items are sliced off afterwards)."""
    x = x.astype(jnp.bfloat16)
    B, H, W, Cin = x.shape
    s, p = prep['stride'], prep['pad']
    KH, KW = prep['orig_KH'], prep['orig_KW']
    KHe, KWe, Ce = prep['KHe'], prep['KWe'], prep['Ce']
    Cout, Cout_store = prep['Cout'], prep['Cout_store']
    fold = prep['fold']

    Ho = (H + 2 * p - KH) // s + 1
    Wo = (W + 2 * p - KW) // s + 1
    Hq = Ho + KHe - 1
    Wq = Wo + KWe - 1

    if s == 1:
        xp = jnp.pad(x, ((0, 0), (p, p), (p, p), (0, 0)))          # (B, Hq, Wq, Ce)
    else:
        # space-to-depth: stride-s conv == stride-1 conv on phase-interleaved input
        xp0 = jnp.pad(x, ((0, 0),
                          (p, s * Hq - H - p),
                          (p, s * Wq - W - p),
                          (0, 0)))
        xp = (xp0.reshape(B, Hq, s, Wq, s, Cin)
                 .transpose(0, 1, 3, 2, 4, 5)
                 .reshape(B, Hq, Wq, Ce))

    # TODO(synk): the (<=3x) width-im2col below is still materialized in HBM; an
    # in-kernel gather (pltpu.roll / column-offset matmuls) would remove it.
    if fold:
        # full KHxKW im2col (cheap: only used when KW*Ce < 128) -> single matmul
        cols = [xp[:, kh:kh + Ho, kw:kw + Wo, :]
                for kh in range(KHe) for kw in range(KWe)]
        xw = jnp.concatenate(cols, axis=-1) if len(cols) > 1 else cols[0]
        xw = xw.reshape(B * Ho * Wo, KHe * KWe * Ce)
        M_total = B * Ho * Wo
    else:
        if KWe == 1:
            xw4 = xp
        else:
            xw4 = jnp.concatenate([xp[:, :, kw:kw + Wo, :] for kw in range(KWe)], axis=-1)
        xw = xw4.reshape(B * Hq * Wo, KWe * Ce)
        tail = (KHe - 1) * Wo
        if tail:                                  # keep kh row-shifts in bounds
            xw = jnp.pad(xw, ((0, tail), (0, 0)))
        M_total = B * Hq * Wo

    if bn is None:
        scale = jnp.ones((Cout,), jnp.float32)
        shift = jnp.zeros((Cout,), jnp.float32)
    else:
        scale, shift = bn
    if Cout_store != Cout:                        # zero scale/shift on padded lanes
        pad_c = Cout_store - Cout
        scale = jnp.pad(scale.astype(jnp.float32), (0, pad_c))
        shift = jnp.pad(shift.astype(jnp.float32), (0, pad_c))

    res = None
    if residual is not None:
        res = residual.astype(jnp.bfloat16)
        if Cout_store != Cout:
            res = jnp.pad(res, ((0, 0), (0, 0), (0, 0), (0, Cout_store - Cout)))
        if (not fold) and KHe > 1:
            res = jnp.pad(res, ((0, 0), (0, KHe - 1), (0, 0), (0, 0)))
        res = res.reshape(M_total, Cout_store)

    out = _fused_conv_pallas(xw, prep['w'], scale, shift, res,
                             relu=relu, M=M_total, Wo=Wo, out_dtype=out_dtype)

    if fold:
        out = out.reshape(B, Ho, Wo, Cout_store)
    else:
        out = out.reshape(B, Hq, Wo, Cout_store)[:, :Ho]
    if Cout_store != Cout:
        out = out[..., :Cout]
    return out                                    # (B, Ho, Wo, Cout)


def convT_bn_act(x, prep, bn=None, relu=False, out_dtype=jnp.bfloat16):
    """ConvTranspose2d(stride=s) via sub-pixel phase decomposition: one stride-1 conv
    producing s*s*Cout phase channels followed by a pixel shuffle (no zero-dilation)."""
    s, pad_before, pad_after = prep['convT']
    Cout = prep['Cout_orig']
    B, H, W, _ = x.shape
    xp = jnp.pad(x.astype(jnp.bfloat16),
                 ((0, 0), (pad_before, pad_after), (pad_before, pad_after), (0, 0)))
    if bn is not None:
        sc, sh = bn
        bn = (jnp.tile(sc, s * s), jnp.tile(sh, s * s))   # replicate BN over phases
    y = conv_bn_act(xp, prep, bn=bn, relu=relu, out_dtype=out_dtype)   # (B,H,W,s*s*Cout)
    y = y.reshape(B, H, W, s, s, Cout).transpose(0, 1, 3, 2, 4, 5)
    return y.reshape(B, s * H, s * W, Cout)


def maxpool_3x3_s2_p1(x):
    # nn.MaxPool2d(3, 2, 1): native reduce_window.
    return lax.reduce_window(x, jnp.array(-jnp.inf, x.dtype), lax.max,
                             window_dimensions=(1, 3, 3, 1),
                             window_strides=(1, 2, 2, 1),
                             padding=((0, 0), (1, 1), (1, 1), (0, 0)))


def upsample_bilinear_2x(x):
    # nn.Upsample(scale_factor=2.0, mode='bilinear', align_corners=False)
    B, H, W, C = x.shape

    def src(n_out, n_in):
        c = (jnp.arange(n_out, dtype=jnp.float32) + 0.5) * 0.5 - 0.5
        c = jnp.maximum(c, 0.0)
        lo = jnp.floor(c).astype(jnp.int32)
        hi = jnp.minimum(lo + 1, n_in - 1)
        frac = c - lo.astype(jnp.float32)
        return lo, hi, frac

    hl, hh, hf = src(2 * H, H)
    wl, wh, wf = src(2 * W, W)
    xf = x.astype(jnp.float32)

    def gather(hidx, widx):
        return xf[:, hidx[:, None], widx[None, :], :]

    v00, v01 = gather(hl, wl), gather(hl, wh)
    v10, v11 = gather(hh, wl), gather(hh, wh)
    hf = hf[None, :, None, None]
    wf = wf[None, None, :, None]
    top = v00 * (1.0 - wf) + v01 * wf
    bot = v10 * (1.0 - wf) + v11 * wf
    return (top * (1.0 - hf) + bot * hf).astype(x.dtype)


# ------------------------------ model blocks -------------------------------

def basic_block(x, p):
    if 'down' in p:
        identity = conv_bn_act(x, p['down'], p['down_bn'], relu=False)
    else:
        identity = x
    out = conv_bn_act(x, p['conv1'], p['bn1'], relu=True)
    # bn2 + residual add + ReLU fused into the conv2 epilogue
    return conv_bn_act(out, p['conv2'], p['bn2'], residual=identity, relu=True)


def transpose_basic_block(x, p):
    ups = convT_bn_act(x, p['up'], p['up_bn'], relu=False)
    out = convT_bn_act(x, p['conv1'], p['bn1'], relu=True)   # Dropout: identity (eval)
    return conv_bn_act(out, p['conv2'], p['bn2'], residual=ups, relu=True)


def resnet_enc_dec_forward(x_nchw, P):
    x = jnp.transpose(x_nchw, (0, 2, 3, 1))                  # NCHW -> NHWC
    # --- encoder (ResNet18) ---
    x = conv_bn_act(x, P['conv1'], P['bn1'], relu=True)
    x = maxpool_3x3_s2_p1(x)
    for layer in ('layer1', 'layer2', 'layer3', 'layer4'):
        for blk in P[layer]:
            x = basic_block(x, blk)
    # --- bottleneck ---
    x = conv_bn_act(x, P['reduce'], relu=False)
    x = conv_bn_act(x, P['nin1'], relu=True)                 # Dropout(0.3): identity
    x = conv_bn_act(x, P['nin2'], relu=True)
    # --- decoder ---
    x = transpose_basic_block(x, P['uplayer1'])
    x = transpose_basic_block(x, P['uplayer2'])
    x = transpose_basic_block(x, P['uplayer3'])
    x = upsample_bilinear_2x(x)
    x = convT_bn_act(x, P['convT_final'], relu=False, out_dtype=jnp.float32)
    # final_activation = Identity
    return jnp.transpose(x, (0, 3, 1, 2))                    # back to NCHW


# ------------------------- parameter preparation ------------------------

def _prep_conv(w_oihw, stride, padding, pad_lanes=False):
    """Pre-layout a Conv2d weight for the fused kernel (done once, outside the fwd)."""
    w = jnp.asarray(w_oihw, jnp.float32)
    Cout, Cin, KH, KW = w.shape
    s = stride
    if s == 1:
        w_e = jnp.transpose(w, (2, 3, 1, 0))                 # (KH, KW, Cin, Cout)
        KHe, KWe, Ce = KH, KW, Cin
    else:
        KHe, KWe = -(-KH // s), -(-KW // s)
        wp = jnp.pad(w, ((0, 0), (0, 0), (0, s * KHe - KH), (0, s * KWe - KW)))
        # (Cout, Cin, KHe, s, KWe, s) -> (KHe, KWe, s, s, Cin, Cout)
        w_e = jnp.transpose(wp.reshape(Cout, Cin, KHe, s, KWe, s), (2, 4, 3, 5, 1, 0))
        Ce = s * s * Cin

    Cout_store = Cout
    if pad_lanes and Cout % 128 != 0:                        # lane-dense stores
        Cout_store = -(-Cout // 128) * 128
        pad_shape = w_e.shape[:-1] + (Cout_store - Cout,)
        w_e = jnp.concatenate([w_e, jnp.zeros(pad_shape, w_e.dtype)], axis=-1)

    fold = (KHe > 1) and (KWe * Ce < 128)                    # tiny-K layers: one matmul
    if fold:
        wmat = w_e.reshape(1, KHe * KWe * Ce, Cout_store)
    else:
        wmat = w_e.reshape(KHe, KWe * Ce, Cout_store)
    wmat = wmat.astype(jnp.bfloat16)

    return {'w': wmat, 'stride': s, 'pad': padding,
            'orig_KH': KH, 'orig_KW': KW, 'KHe': KHe, 'KWe': KWe, 'Ce': Ce,
            'Cout': Cout, 'Cout_store': Cout_store, 'fold': fold}


def _prep_convT(w_iohw, stride, padding, output_padding, pad_lanes=False):
    """ConvTranspose2d weight -> equivalent stride-1 phase-conv weight (sub-pixel
    decomposition).  Channel c = (a*s + b)*Cout + co is output phase (a, b)."""
    w = jnp.asarray(w_iohw, jnp.float32)                     # (Cin, Cout, K, K)
    Cin, Cout, KH, KW = w.shape
    s, p, op = stride, padding, output_padding
    assert KH == KW
    K = KH
    assert K + op - 2 * p == s, "unsupported ConvTranspose2d geometry"

    d_lo, d_hi = [], []
    for a in range(s):                                       # valid tap offsets per phase
        lo = -((a + p) // s)
        hi = (K - 1 - a - p) // s
        if hi >= lo:
            d_lo.append(lo)
            d_hi.append(hi)
    D_min, D_max = min(d_lo), max(d_hi)
    Kp = D_max - D_min + 1
    pad_before, pad_after = D_max, -D_min
    assert pad_before >= 0 and pad_after >= 0

    w_eq = jnp.zeros((s * s * Cout, Cin, Kp, Kp), jnp.float32)   # OIHW
    for a in range(s):
        for b in range(s):
            for th in range(Kp):
                kh = s * (D_max - th) + a + p
                if not (0 <= kh < K):
                    continue
                for tw in range(Kp):
                    kw = s * (D_max - tw) + b + p
                    if not (0 <= kw < K):
                        continue
                    blk = jnp.transpose(w[:, :, kh, kw], (1, 0))   # (Cout, Cin)
                    ph = (a * s + b) * Cout
                    w_eq = w_eq.at[ph:ph + Cout, :, th, tw].set(blk)

    prep = _prep_conv(w_eq, 1, 0, pad_lanes=pad_lanes)
    prep['convT'] = (s, pad_before, pad_after)
    prep['Cout_orig'] = Cout
    return prep


def _prep_bn(bn, eps=1e-5):
    gamma, beta, mean, var = bn
    scale = (gamma / jnp.sqrt(var + eps)).astype(jnp.float32)
    shift = (beta - mean * scale).astype(jnp.float32)
    return (scale, shift)


def prepare_params(raw):
    def bb(p):
        d = {'conv1': _prep_conv(p['conv1_w'], p['stride'], 1), 'bn1': _prep_bn(p['bn1']),
             'conv2': _prep_conv(p['conv2_w'], 1, 1), 'bn2': _prep_bn(p['bn2'])}
        if 'down_w' in p:
            d['down'] = _prep_conv(p['down_w'], p['stride'], 0)
            d['down_bn'] = _prep_bn(p['down_bn'])
        return d

    def tbb(p):
        return {'conv1': _prep_convT(p['conv1_w'], 2, 1, 1, pad_lanes=True),
                'bn1': _prep_bn(p['bn1']),
                'conv2': _prep_conv(p['conv2_w'], 1, 1, pad_lanes=True),
                'bn2': _prep_bn(p['bn2']),
                'up': _prep_convT(p['up_w'], 2, 0, 1, pad_lanes=True),
                'up_bn': _prep_bn(p['up_bn'])}

    P = {'conv1': _prep_conv(raw['conv1_w'], 2, 3), 'bn1': _prep_bn(raw['bn1']),
         'reduce': _prep_conv(raw['reduce_w'], 1, 0),
         'nin1': _prep_conv(raw['nin1_w'], 1, 0),
         'nin2': _prep_conv(raw['nin2_w'], 1, 0),
         'convT_final': _prep_convT(raw['convT_final_w'], 2, 3, 1, pad_lanes=True)}
    for layer in ('layer1', 'layer2', 'layer3', 'layer4'):
        P[layer] = [bb(b) for b in raw[layer]]
    for ul in ('uplayer1', 'uplayer2', 'uplayer3'):
        P[ul] = tbb(raw[ul])
    return P


# ------------------------- deterministic raw parameters ------------------------

def make_params(seed=0):
    state = [jax.random.PRNGKey(seed)]

    def nk():
        state[0], sub = jax.random.split(state[0])
        return sub

    def conv_w(cout, cin, kh, kw):           # nn.Conv2d weight (OIHW)
        fan_in = cin * kh * kw
        return (jax.random.normal(nk(), (cout, cin, kh, kw), jnp.float32)
                * jnp.sqrt(2.0 / fan_in))

    def convT_w(cin, cout, kh, kw):          # nn.ConvTranspose2d weight (IOHW)
        fan_in = cin * kh * kw
        return (jax.random.normal(nk(), (cin, cout, kh, kw), jnp.float32)
                * jnp.sqrt(2.0 / fan_in))

    def bn_p(c):                             # (gamma, beta, running_mean, running_var)
        gamma = 1.0 + 0.1 * jax.random.normal(nk(), (c,), jnp.float32)
        beta = 0.1 * jax.random.normal(nk(), (c,), jnp.float32)
        mean = 0.1 * jax.random.normal(nk(), (c,), jnp.float32)
        var = 1.0 + 0.1 * jnp.abs(jax.random.normal(nk(), (c,), jnp.float32))
        return (gamma, beta, mean, var)

    def basic_block_params(cin, cout, stride):
        p = {'conv1_w': conv_w(cout, cin, 3, 3), 'bn1': bn_p(cout),
             'conv2_w': conv_w(cout, cout, 3, 3), 'bn2': bn_p(cout),
             'stride': stride}
        if stride != 1 or cin != cout:
            p['down_w'] = conv_w(cout, cin, 1, 1)
            p['down_bn'] = bn_p(cout)
        return p

    def tbb_params(cin, cout):
        return {'conv1_w': convT_w(cin, cout, 3, 3), 'bn1': bn_p(cout),
                'conv2_w': conv_w(cout, cout, 3, 3), 'bn2': bn_p(cout),
                'up_w': convT_w(cin, cout, 1, 1), 'up_bn': bn_p(cout)}

    params = {
        'conv1_w': conv_w(64, 3, 7, 7),
        'bn1': bn_p(64),
        'layer1': [basic_block_params(64, 64, 1), basic_block_params(64, 64, 1)],
        'layer2': [basic_block_params(64, 128, 2), basic_block_params(128, 128, 1)],
        'layer3': [basic_block_params(128, 256, 2), basic_block_params(256, 256, 1)],
        'layer4': [basic_block_params(256, 512, 2), basic_block_params(512, 512, 1)],
        'reduce_w': conv_w(256, 512, 1, 1),
        'nin1_w': conv_w(128, 256, 1, 1),
        'nin2_w': conv_w(64, 128, 1, 1),
        'uplayer1': tbb_params(64, 64),
        'uplayer2': tbb_params(64, 32),
        'uplayer3': tbb_params(32, 16),
        'convT_final_w': convT_w(16, 3, 7, 7),
    }
    return params


# ----------------------------- numerical self-check -----------------------------

def _ref_conv2d(x_nhwc, w_oihw, stride, pad):
    w_hwio = jnp.transpose(w_oihw, (2, 3, 1, 0))
    return lax.conv_general_dilated(
        x_nhwc, w_hwio, (stride, stride), [(pad, pad), (pad, pad)],
        dimension_numbers=('NHWC', 'HWIO', 'NHWC'),
        precision=lax.Precision.HIGHEST)


def _ref_convT2d(x_nhwc, w_iohw, stride, pad, out_pad):
    K = w_iohw.shape[-1]
    w_hwio = jnp.transpose(w_iohw[:, :, ::-1, ::-1], (2, 3, 0, 1))
    lo, hi = K - 1 - pad, K - 1 - pad + out_pad
    return lax.conv_general_dilated(
        x_nhwc, w_hwio, (1, 1), [(lo, hi), (lo, hi)],
        lhs_dilation=(stride, stride),
        dimension_numbers=('NHWC', 'HWIO', 'NHWC'),
        precision=lax.Precision.HIGHEST)


def _self_check():
    def close(got, ref, name):
        got = jnp.asarray(got, jnp.float32)
        ref = jnp.asarray(ref, jnp.float32)
        assert got.shape == ref.shape, (name, got.shape, ref.shape)
        err = float(jnp.max(jnp.abs(got - ref)))
        bound = 3e-2 * (float(jnp.max(jnp.abs(ref))) + 1.0)
        assert err <= bound, f"{name}: max abs err {err} > {bound}"

    ks = jax.random.split(jax.random.PRNGKey(1), 8)

    def bf(a):
        return a.astype(jnp.bfloat16).astype(jnp.float32)

    # (1) 7x7 stride-2 conv  (space-to-depth + KH-fold path, like the stem)
    x = jax.random.normal(ks[0], (2, 18, 18, 3), jnp.float32)
    w = jax.random.normal(ks[1], (8, 3, 7, 7), jnp.float32) * 0.2
    got = conv_bn_act(x, _prep_conv(w, 2, 3), out_dtype=jnp.float32)
    close(got, _ref_conv2d(bf(x), bf(w), 2, 3), "conv 7x7 s2")

    # (2) ConvTranspose2d 3x3 s2 p1 op1  (phase decomposition, KH-decomposed path)
    x = jax.random.normal(ks[2], (2, 6, 6, 64), jnp.float32)
    w = jax.random.normal(ks[3], (64, 16, 3, 3), jnp.float32) * 0.1
    got = convT_bn_act(x, _prep_convT(w, 2, 1, 1, pad_lanes=True), out_dtype=jnp.float32)
    close(got, _ref_convT2d(bf(x), bf(w), 2, 1, 1), "convT 3x3 s2")

    # (3) ConvTranspose2d 1x1 s2 op1  (empty phases -> zero interleave)
    x = jax.random.normal(ks[4], (2, 6, 6, 32), jnp.float32)
    w = jax.random.normal(ks[5], (32, 16, 1, 1), jnp.float32) * 0.2
    got = convT_bn_act(x, _prep_convT(w, 2, 0, 1, pad_lanes=True), out_dtype=jnp.float32)
    close(got, _ref_convT2d(bf(x), bf(w), 2, 0, 1), "convT 1x1 s2")

    # (4) ConvTranspose2d 7x7 s2 p3 op1  (phase + KH-fold + lane padding, output layer)
    x = jax.random.normal(ks[6], (2, 8, 8, 16), jnp.float32)
    w = jax.random.normal(ks[7], (16, 3, 7, 7), jnp.float32) * 0.1
    got = convT_bn_act(x, _prep_convT(w, 2, 3, 1, pad_lanes=True), out_dtype=jnp.float32)
    close(got, _ref_convT2d(bf(x), bf(w), 2, 3, 1), "convT 7x7 s2")


# ----------------------------------- main -----------------------------------

if __name__ == "__main__":
    _self_check()                                 # per-op validation vs lax reference

    key = jax.random.PRNGKey(0)
    # input in PyTorch NCHW convention; H, W multiples of 32
    x = jax.random.normal(key, (2, 3, 64, 64), jnp.float32)

    raw_params = make_params(seed=0)
    P = prepare_params(raw_params)                # one-time weight re-layout / BN folding

    fwd = jax.jit(lambda inp: resnet_enc_dec_forward(inp, P))
    y = jax.block_until_ready(fwd(x))

    assert y.shape == (2, 3, 64, 64), y.shape
    assert bool(jnp.all(jnp.isfinite(y)))
    print("KERNEL_OK")
</pallas_src>

<mosaic_0001>
module attributes {stable_mosaic.version = 11 : i64} {
  func.func @_conv_fused_kernel(%arg0: i32, %arg1: memref<162x192xbf16, #tpu.memory_space<vmem>>, %arg2: memref<1x192x8xbf16, #tpu.memory_space<vmem>>, %arg3: memref<1x8xf32, #tpu.memory_space<vmem>>, %arg4: memref<1x8xf32, #tpu.memory_space<vmem>>, %arg5: memref<162x8xf32, #tpu.memory_space<vmem>>) attributes {dimension_semantics = [#tpu.dimension_semantics<parallel>], iteration_bounds = array<i64: 1>, scalar_prefetch = 0 : i64, scratch_operands = 0 : i64, tpu.core_type = #tpu.core_type<tc>, window_params = [{pipeline_mode = #tpu.pipeline_mode<synchronous>, transform_indices = @transform_0, window_bounds = array<i64: 162, 192>}, {transform_indices = @transform_1, window_bounds = array<i64: 1, 192, 8>}, {transform_indices = @transform_2, window_bounds = array<i64: 1, 8>}, {transform_indices = @transform_3, window_bounds = array<i64: 1, 8>}, {transform_indices = @transform_4, window_bounds = array<i64: 162, 8>}]} {
    %c0 = arith.constant 0 : index
    %c0_0 = arith.constant 0 : index
    %0 = vector.load %arg1[%c0, %c0_0] : memref<162x192xbf16, #tpu.memory_space<vmem>>, vector<162x192xbf16>
    %c0_1 = arith.constant 0 : index
    %c0_2 = arith.constant 0 : index
    %c0_3 = arith.constant 0 : index
    %1 = vector.load %arg2[%c0_1, %c0_2, %c0_3] : memref<1x192x8xbf16, #tpu.memory_space<vmem>>, vector<1x192x8xbf16>
    %2 = vector.shape_cast %1 : vector<1x192x8xbf16> to vector<192x8xbf16>
    %cst = arith.constant dense<0.000000e+00> : vector<162x8xf32>
    %3 = tpu.matmul %0, %2, %cst {dimension_numbers = #tpu.dot_dimension_numbers<[1], [0], [0], [1], [0, 0, 1, 1], [], []>} : vector<162x192xbf16>, vector<192x8xbf16>, vector<162x8xf32> -> vector<162x8xf32>
    %c0_4 = arith.constant 0 : index
    %c0_5 = arith.constant 0 : index
    %4 = vector.load %arg3[%c0_4, %c0_5] : memref<1x8xf32, #tpu.memory_space<vmem>>, vector<1x8xf32>
    %5 = vector.broadcast %4 : vector<1x8xf32> to vector<162x8xf32>
    %6 = arith.mulf %3, %5 : vector<162x8xf32>
    %c0_6 = arith.constant 0 : index
    %c0_7 = arith.constant 0 : index
    %7 = vector.load %arg4[%c0_6, %c0_7] : memref<1x8xf32, #tpu.memory_space<vmem>>, vector<1x8xf32>
    %8 = vector.broadcast %7 : vector<1x8xf32> to vector<162x8xf32>
    %9 = arith.addf %6, %8 : vector<162x8xf32>
    %c0_8 = arith.constant 0 : index
    %c0_9 = arith.constant 0 : index
    %10 = vector.load %arg5[%c0_8, %c0_9] : memref<162x8xf32, #tpu.memory_space<vmem>>, vector<162x8xf32>
    tpu.vector_store %arg5[%c0_8, %c0_9], %9 {strides = array<i32>} : memref<162x8xf32, #tpu.memory_space<vmem>>, vector<162x8xf32>,
    return
  }
  func.func @transform_0(%arg0: i32) -> (i32, i32) {
    %c0_i32 = arith.constant 0 : i32
    %c0_i32_0 = arith.constant 0 : i32
    %c0_i32_1 = arith.constant 0 : i32
    return %c0_i32, %c0_i32_0 : i32, i32
  }
  func.func @transform_1(%arg0: i32) -> (i32, i32, i32) {
    %c0_i32 = arith.constant 0 : i32
    %c0_i32_0 = arith.constant 0 : i32
    %c0_i32_1 = arith.constant 0 : i32
    return %c0_i32, %c0_i32_0, %arg0 : i32, i32, i32
  }
  func.func @transform_2(%arg0: i32) -> (i32, i32) {
    %c0_i32 = arith.constant 0 : i32
    %c0_i32_0 = arith.constant 0 : i32
    return %c0_i32, %arg0 : i32, i32
  }
  func.func @transform_3(%arg0: i32) -> (i32, i32) {
    %c0_i32 = arith.constant 0 : i32
    %c0_i32_0 = arith.constant 0 : i32
    return %c0_i32, %arg0 : i32, i32
  }
  func.func @transform_4(%arg0: i32) -> (i32, i32) {
    %c0_i32 = arith.constant 0 : i32
    %c0_i32_0 = arith.constant 0 : i32
    return %c0_i32, %arg0 : i32, i32
  }
}

</mosaic_0001>

<llo_original>
// kernel: tpu_custom_call.1
$region0: #{tpu_custom_call.1}
  #allocation0 [shape = 'u32[]', space=smem, size = 0x4, offset = 0x4, fixed_abs, tag = 'smem constant byte address 0x4 - core index']
  #allocation1 [shape = 'u32[72,128]{1,0:T(1,128)}', space=vmem, size = 0x9000, scoped, tag = 'internal scratch']
  %s0 = inlined_call_operand.hbm [shape: bf16[162,192], index: 0, kind: input, shape index: {}]
  %s1 = inlined_call_operand.vmem [shape: bf16[1,192,8], index: 1, kind: input, shape index: {}]
  %s2 = inlined_call_operand.vmem [shape: f32[1,8], index: 2, kind: input, shape index: {}]
  %s3 = inlined_call_operand.vmem [shape: f32[1,8], index: 3, kind: input, shape index: {}]
  %s4 = inlined_call_operand.vmem [shape: f32[162,8], index: 4, kind: output, shape index: {}]
  %s5 = sld [smem:[#allocation0]]
  $region30: #{tpu_custom_call.1} parent=0
    _
  %s7 = ssub.s32 1, %s5
  %s8 = scalar_select 0, %s7, %s5
  $region1: #{tpu_custom_call.1} parent=0
    #allocation2 [shape = 'u8[86016]{0}', space=vmem, size = 0x15000, scoped, tag = 'input window, operand 0, single buffered']
    #allocation3 [shape = 's32[1]{0}', space=sflag, size = 0x4, scoped, tag = 'scoped memory for tpu_custom_call.1']
    %9 = vsyncpa [#allocation3], 0
    // Predicated region
    $region2: #{tpu_custom_call.1} parent=1 // pred_check
      _
    $region3: #{tpu_custom_call.1} parent=1 // pred_check_branch
      %11 = sbr.rel (0) target = $region5
    $region4: #{tpu_custom_call.1} parent=1 // pred_region
      %13 = vsyncadd [#allocation3], 0
      %s14 = sshll.u32 %s0, 4
      %s15 = int_to_ptr.hbm [resolvable:$true] %s14
      %s16 = sshll.u32 [#allocation2], 4
      %s17 = int_to_ptr.vmem [resolvable:$true] %s16
      %22 = dma.hbm_to_vmem [thread:$0]  %s15, 2688, %s17, [#allocation3], 128, 128, 8
    $region5: #{tpu_custom_call.1} parent=1 // pred_fallthru
      _
    // Predicated region
    $region6: #{tpu_custom_call.1} parent=1 // pred_check
      _
    $region7: #{tpu_custom_call.1} parent=1 // pred_check_branch
      %24 = sbr.rel (0) target = $region9
    $region8: #{tpu_custom_call.1} parent=1 // pred_region
      _
    $region9: #{tpu_custom_call.1} parent=1 // pred_fallthru
      _
    // Predicated region
    $region10: #{tpu_custom_call.1} parent=1 // pred_check
      _
    $region11: #{tpu_custom_call.1} parent=1 // pred_check_branch
      %26 = sbr.rel (0) target = $region13
    $region12: #{tpu_custom_call.1} parent=1 // pred_region
      _
    $region13: #{tpu_custom_call.1} parent=1 // pred_fallthru
      _
    // Predicated region
    $region14: #{tpu_custom_call.1} parent=1 // pred_check
      _
    $region15: #{tpu_custom_call.1} parent=1 // pred_check_branch
      %28 = sbr.rel (0) target = $region17
    $region16: #{tpu_custom_call.1} parent=1 // pred_region
      _
    $region17: #{tpu_custom_call.1} parent=1 // pred_fallthru
      _
    // Predicated region
    $region18: #{tpu_custom_call.1} parent=1 // pred_check
      _
    $region19: #{tpu_custom_call.1} parent=1 // pred_check_branch
      %30 = sbr.rel (0) target = $region21
    $region20: #{tpu_custom_call.1} parent=1 // pred_region
      %32 = dma.done [#allocation3], 2688
    $region21: #{tpu_custom_call.1} parent=1 // pred_fallthru
      _
    %v34 = vld [vmem:[#allocation2] sm:$0xff]
    %v35 = vld [vmem:[#allocation2 + $0x8] sm:$0xff]
    %v36 = vld [vmem:[#allocation2 + $0x10] sm:$0xff]
    %v37 = vld [vmem:[#allocation2 + $0x18] sm:$0xff]
    %v38 = vld [vmem:[#allocation2 + $0x20] sm:$0xff]
    %v39 = vld [vmem:[#allocation2 + $0x28] sm:$0xff]
    %v40 = vld [vmem:[#allocation2 + $0x30] sm:$0xff]
    %v41 = vld [vmem:[#allocation2 + $0x38] sm:$0xff]
    %v42 = vld [vmem:[#allocation2 + $0x40] sm:$0xff]
    %v43 = vld [vmem:[#allocation2 + $0x48] sm:$0xff]
    %v44 = vld [vmem:[#allocation2 + $0x50] sm:$0xff]
    %v45 = vld [vmem:[#allocation2 + $0x58] sm:$0xff]
    %v46 = vld [vmem:[#allocation2 + $0x60] sm:$0xff]
    %v47 = vld [vmem:[#allocation2 + $0x68] sm:$0xff]
    %v48 = vld [vmem:[#allocation2 + $0x70] sm:$0xff]
    %v49 = vld [vmem:[#allocation2 + $0x78] sm:$0xff]
    %v50 = vld [vmem:[#allocation2 + $0x80] sm:$0xff]
    %v51 = vld [vmem:[#allocation2 + $0x88] sm:$0xff]
    %v52 = vld [vmem:[#allocation2 + $0x90] sm:$0xff]
    %v53 = vld [vmem:[#allocation2 + $0x98] sm:$0xff]
    %v54 = vld [vmem:[#allocation2 + $0xa0] sm:$0x11]
    %v55 = vld [vmem:[%s1] sm:$0xf]
    %v56 = vld [vmem:[%s1 + $0x4] sm:$0xf]
    %v57 = vld [vmem:[%s1 + $0x8] sm:$0xf]
    %v58 = vld [vmem:[%s1 + $0xc] sm:$0xf]
    %v59 = vld [vmem:[%s1 + $0x10] sm:$0xf]
    %v60 = vld [vmem:[%s1 + $0x14] sm:$0xf]
    %v61 = vld [vmem:[%s1 + $0x18] sm:$0xf]
    %v62 = vld [vmem:[%s1 + $0x1c] sm:$0xf]
    %v63 = vld [vmem:[%s1 + $0x20] sm:$0xf]
    %v64 = vld [vmem:[%s1 + $0x24] sm:$0xf]
    %v65 = vld [vmem:[%s1 + $0x28] sm:$0xf]
    %v66 = vld [vmem:[%s1 + $0x2c] sm:$0xf]
    %v67 = vld [vmem:[%s1 + $0x30] sm:$0xf]
    %v68 = vld [vmem:[%s1 + $0x34] sm:$0xf]
    %v69 = vld [vmem:[%s1 + $0x38] sm:$0xf]
    %v70 = vld [vmem:[%s1 + $0x3c] sm:$0xf]
    %v71 = vld [vmem:[%s1 + $0x40] sm:$0xf]
    %v72 = vld [vmem:[%s1 + $0x44] sm:$0xf]
    %v73 = vld [vmem:[%s1 + $0x48] sm:$0xf]
    %v74 = vld [vmem:[%s1 + $0x4c] sm:$0xf]
    %v75 = vld [vmem:[%s1 + $0x50] sm:$0xf]
    %v76 = vld [vmem:[%s1 + $0x54] sm:$0xf]
    %v77 = vld [vmem:[%s1 + $0x58] sm:$0xf]
    %v78 = vld [vmem:[%s1 + $0x5c] sm:$0xf]
    %v100 = vunpack.c.l.b16 %v34
    %v101 = vunpack.c.h.b16 %v34
    %v102 = vunpack.c.l.b16 %v35
    %v103 = vunpack.c.h.b16 %v35
    %v104 = vunpack.c.l.b16 %v36
    %v105 = vunpack.c.h.b16 %v36
    %v106 = vunpack.c.l.b16 %v37
    %v107 = vunpack.c.h.b16 %v37
    %v108 = vunpack.c.l.b16 %v38
    %v109 = vunpack.c.h.b16 %v38
    %v110 = vunpack.c.l.b16 %v39
    %v111 = vunpack.c.h.b16 %v39
    %v112 = vunpack.c.l.b16 %v40
    %v113 = vunpack.c.h.b16 %v40
    %v114 = vunpack.c.l.b16 %v41
    %v115 = vunpack.c.h.b16 %v41
    %v116 = vunpack.c.l.b16 %v42
    %v117 = vunpack.c.h.b16 %v42
    %v118 = vunpack.c.l.b16 %v43
    %v119 = vunpack.c.h.b16 %v43
    %v120 = vunpack.c.l.b16 %v44
    %v121 = vunpack.c.h.b16 %v44
    %v122 = vunpack.c.l.b16 %v45
    %v123 = vunpack.c.h.b16 %v45
    %v124 = vunpack.c.l.b16 %v46
    %v125 = vunpack.c.h.b16 %v46
    %v126 = vunpack.c.l.b16 %v47
    %v127 = vunpack.c.h.b16 %v47
    %v128 = vunpack.c.l.b16 %v48
    %v129 = vunpack.c.h.b16 %v48
    %v130 = vunpack.c.l.b16 %v49
    %v131 = vunpack.c.h.b16 %v49
    %v132 = vunpack.c.l.b16 %v50
    %v133 = vunpack.c.h.b16 %v50
    %v134 = vunpack.c.l.b16 %v51
    %v135 = vunpack.c.h.b16 %v51
    %v136 = vunpack.c.l.b16 %v52
    %v137 = vunpack.c.h.b16 %v52
    %v138 = vunpack.c.l.b16 %v53
    %v139 = vunpack.c.h.b16 %v53
    %v140 = vunpack.c.l.b16 %v54
    %v141 = vunpack.c.h.b16 %v54
    %v142 = vpack.c.b16 %v102, %v100
    %v143 = vpack.c.b16 %v103, %v101
    %v144 = vpack.c.b16 %v106, %v104
    %v145 = vpack.c.b16 %v107, %v105
    %v146 = vpack.c.b16 %v110, %v108
    %v147 = vpack.c.b16 %v111, %v109
    %v148 = vpack.c.b16 %v114, %v112
    %v149 = vpack.c.b16 %v115, %v113
    %v150 = vpack.c.b16 %v118, %v116
    %v151 = vpack.c.b16 %v119, %v117
    %v152 = vpack.c.b16 %v122, %v120
    %v153 = vpack.c.b16 %v123, %v121
    %v154 = vpack.c.b16 %v126, %v124
    %v155 = vpack.c.b16 %v127, %v125
    %v156 = vpack.c.b16 %v130, %v128
    %v157 = vpack.c.b16 %v131, %v129
    %v158 = vpack.c.b16 %v134, %v132
    %v159 = vpack.c.b16 %v135, %v133
    %v160 = vpack.c.b16 %v138, %v136
    %v161 = vpack.c.b16 %v139, %v137
    %v162 = vpack.c.b16 %v140, %v140
    %v163 = vpack.c.b16 %v141, %v141
    %v199 = vunpack.c.l.b16 %v55
    %v200 = vunpack.c.l.b16 %v56
    %v201 = vunpack.c.l.b16 %v57
    %v202 = vunpack.c.l.b16 %v58
    %v203 = vunpack.c.l.b16 %v59
    %v204 = vunpack.c.l.b16 %v60
    %v205 = vunpack.c.l.b16 %v61
    %v206 = vunpack.c.l.b16 %v62
    %v207 = vunpack.c.l.b16 %v63
    %v208 = vunpack.c.l.b16 %v64
    %v209 = vunpack.c.l.b16 %v65
    %v210 = vunpack.c.l.b16 %v66
    %v211 = vunpack.c.l.b16 %v67
    %v212 = vunpack.c.l.b16 %v68
    %v213 = vunpack.c.l.b16 %v69
    %v214 = vunpack.c.l.b16 %v70
    %v215 = vunpack.c.l.b16 %v71
    %v216 = vunpack.c.l.b16 %v72
    %v217 = vunpack.c.l.b16 %v73
    %v218 = vunpack.c.l.b16 %v74
    %v219 = vunpack.c.l.b16 %v75
    %v220 = vunpack.c.l.b16 %v76
    %v221 = vunpack.c.l.b16 %v77
    %v222 = vunpack.c.l.b16 %v78
    %v223 = vpack.c.b16 %v200, %v199
    %v224 = vpack.c.b16 %v202, %v201
    %v225 = vpack.c.b16 %v204, %v203
    %v226 = vpack.c.b16 %v206, %v205
    %v227 = vpack.c.b16 %v208, %v207
    %v228 = vpack.c.b16 %v210, %v209
    %v229 = vpack.c.b16 %v212, %v211
    %v230 = vpack.c.b16 %v214, %v213
    %v231 = vpack.c.b16 %v216, %v215
    %v232 = vpack.c.b16 %v218, %v217
    %v233 = vpack.c.b16 %v220, %v219
    %v234 = vpack.c.b16 %v222, %v221
    %vm247 = vcmask 523264
    %v249 = vsel %vm247, %v143, 0
    %v252 = vsel %vm247, %v145, 0
    %v255 = vsel %vm247, %v147, 0
    %v258 = vsel %vm247, %v149, 0
    %v261 = vsel %vm247, %v151, 0
    %v264 = vsel %vm247, %v153, 0
    %v267 = vsel %vm247, %v155, 0
    %v270 = vsel %vm247, %v157, 0
    %v273 = vsel %vm247, %v159, 0
    %v276 = vsel %vm247, %v161, 0
    %v279 = vsel %vm247, %v163, 0
    %281 = vmatpush.bf16.msra.mxu0 %v230
    %282 = vmatpush.bf16.msra.mxu0 %v229
    %283 = vmatpush.bf16.msra.mxu0 %v228
    %284 = vmatpush.bf16.msra.mxu0 %v227
    %285 = vmatpush.bf16.msra.mxu0 %v226
    %286 = vmatpush.bf16.msra.mxu0 %v225
    %287 = vmatpush.bf16.msra.mxu0 %v224
    %288 = vmatpush.bf16.msra.mxu0 %v223
    %289 = vmatmul.bf16.gmra.mxu0 %v142
    %v290 = vpop.f32.mrf.mxu0
    %v291 = vadd.f32 0.0, %v290
    %v292 = vpop.f32.mrf.mxu0
    %v293 = vadd.f32 0.0, %v292
    %294 = vmatmul.bf16.gmra.mxu0 %v144
    %v295 = vpop.f32.mrf.mxu0
    %v296 = vadd.f32 0.0, %v295
    %v297 = vpop.f32.mrf.mxu0
    %v298 = vadd.f32 0.0, %v297
    %299 = vmatmul.bf16.gmra.mxu0 %v146
    %v300 = vpop.f32.mrf.mxu0
    %v301 = vadd.f32 0.0, %v300
    %v302 = vpop.f32.mrf.mxu0
    %v303 = vadd.f32 0.0, %v302
    %304 = vmatmul.bf16.gmra.mxu0 %v148
    %v305 = vpop.f32.mrf.mxu0
    %v306 = vadd.f32 0.0, %v305
    %v307 = vpop.f32.mrf.mxu0
    %v308 = vadd.f32 0.0, %v307
    %309 = vmatmul.bf16.gmra.mxu0 %v150
    %v310 = vpop.f32.mrf.mxu0
    %v311 = vadd.f32 0.0, %v310
    %v312 = vpop.f32.mrf.mxu0
    %v313 = vadd.f32 0.0, %v312
    %314 = vmatmul.bf16.gmra.mxu0 %v152
    %v315 = vpop.f32.mrf.mxu0
    %v316 = vadd.f32 0.0, %v315
    %v317 = vpop.f32.mrf.mxu0
    %v318 = vadd.f32 0.0, %v317
    %319 = vmatmul.bf16.gmra.mxu0 %v154
    %v320 = vpop.f32.mrf.mxu0
    %v321 = vadd.f32 0.0, %v320
    %v322 = vpop.f32.mrf.mxu0
    %v323 = vadd.f32 0.0, %v322
    %324 = vmatmul.bf16.gmra.mxu0 %v156
    %v325 = vpop.f32.mrf.mxu0
    %v326 = vadd.f32 0.0, %v325
    %v327 = vpop.f32.mrf.mxu0
    %v328 = vadd.f32 0.0, %v327
    %329 = vmatmul.bf16.gmra.mxu0 %v158
    %v330 = vpop.f32.mrf.mxu0
    %v331 = vadd.f32 0.0, %v330
    %v332 = vpop.f32.mrf.mxu0
    %v333 = vadd.f32 0.0, %v332
    %334 = vmatmul.bf16.gmra.mxu0 %v160
    %v335 = vpop.f32.mrf.mxu0
    %v336 = vadd.f32 0.0, %v335
    %v337 = vpop.f32.mrf.mxu0
    %v338 = vadd.f32 0.0, %v337
    %339 = vmatmul.bf16.gmra.mxu0 %v162
    %v340 = vpop.f32.mrf.mxu0
    %v341 = vadd.f32 0.0, %v340
    %v342 = vpop.f32.mrf.mxu0
    %343 = vdwg.mxu0
    %344 = vmatpush.bf16.msra.mxu0 0
    %345 = vmatpush.bf16.msra.mxu0 0
    %346 = vmatpush.bf16.msra.mxu0 0
    %347 = vmatpush.bf16.msra.mxu0 0
    %348 = vmatpush.bf16.msra.mxu0 %v234
    %349 = vmatpush.bf16.msra.mxu0 %v233
    %350 = vmatpush.bf16.msra.mxu0 %v232
    %351 = vmatpush.bf16.msra.mxu0 %v231
    %352 = vmatmul.bf16.gmra.mxu0 %v249
    %v353 = vpop.f32.mrf.mxu0
    %v354 = vadd.f32 %v291, %v353
    %v355 = vpop.f32.mrf.mxu0
    %v356 = vadd.f32 %v293, %v355
    %357 = vmatmul.bf16.gmra.mxu0 %v252
    %v358 = vpop.f32.mrf.mxu0
    %v359 = vadd.f32 %v296, %v358
    %v360 = vpop.f32.mrf.mxu0
    %v361 = vadd.f32 %v298, %v360
    %362 = vmatmul.bf16.gmra.mxu0 %v255
    %v363 = vpop.f32.mrf.mxu0
    %v364 = vadd.f32 %v301, %v363
    %v365 = vpop.f32.mrf.mxu0
    %v366 = vadd.f32 %v303, %v365
    %367 = vmatmul.bf16.gmra.mxu0 %v258
    %v368 = vpop.f32.mrf.mxu0
    %v369 = vadd.f32 %v306, %v368
    %v370 = vpop.f32.mrf.mxu0
    %v371 = vadd.f32 %v308, %v370
    %372 = vmatmul.bf16.gmra.mxu0 %v261
    %v373 = vpop.f32.mrf.mxu0
    %v374 = vadd.f32 %v311, %v373
    %v375 = vpop.f32.mrf.mxu0
    %v376 = vadd.f32 %v313, %v375
    %377 = vmatmul.bf16.gmra.mxu0 %v264
    %v378 = vpop.f32.mrf.mxu0
    %v379 = vadd.f32 %v316, %v378
    %v380 = vpop.f32.mrf.mxu0
    %v381 = vadd.f32 %v318, %v380
    %382 = vmatmul.bf16.gmra.mxu0 %v267
    %v383 = vpop.f32.mrf.mxu0
    %v384 = vadd.f32 %v321, %v383
    %v385 = vpop.f32.mrf.mxu0
    %v386 = vadd.f32 %v323, %v385
    %387 = vmatmul.bf16.gmra.mxu0 %v270
    %v388 = vpop.f32.mrf.mxu0
    %v389 = vadd.f32 %v326, %v388
    %v390 = vpop.f32.mrf.mxu0
    %v391 = vadd.f32 %v328, %v390
    %392 = vmatmul.bf16.gmra.mxu0 %v273
    %v393 = vpop.f32.mrf.mxu0
    %v394 = vadd.f32 %v331, %v393
    %v395 = vpop.f32.mrf.mxu0
    %v396 = vadd.f32 %v333, %v395
    %397 = vmatmul.bf16.gmra.mxu0 %v276
    %v398 = vpop.f32.mrf.mxu0
    %v399 = vadd.f32 %v336, %v398
    %v400 = vpop.f32.mrf.mxu0
    %v401 = vadd.f32 %v338, %v400
    %402 = vmatmul.bf16.gmra.mxu0 %v279
    %v403 = vpop.f32.mrf.mxu0
    %v404 = vadd.f32 %v341, %v403
    %v405 = vpop.f32.mrf.mxu0
    %406 = vdwg.mxu0
    %v407 = vld [vmem:[%s2] sm:$0x1]
    %v409 = vperm.slane %v407, 0
    %v411 = vmul.f32 %v354, %v409
    %v412 = vmul.f32 %v356, %v409
    %v413 = vmul.f32 %v359, %v409
    %v414 = vmul.f32 %v361, %v409
    %v415 = vmul.f32 %v364, %v409
    %v416 = vmul.f32 %v366, %v409
    %v417 = vmul.f32 %v369, %v409
    %v418 = vmul.f32 %v371, %v409
    %v419 = vmul.f32 %v374, %v409
    %v420 = vmul.f32 %v376, %v409
    %v421 = vmul.f32 %v379, %v409
    %v422 = vmul.f32 %v381, %v409
    %v423 = vmul.f32 %v384, %v409
    %v424 = vmul.f32 %v386, %v409
    %v425 = vmul.f32 %v389, %v409
    %v426 = vmul.f32 %v391, %v409
    %v427 = vmul.f32 %v394, %v409
    %v428 = vmul.f32 %v396, %v409
    %v429 = vmul.f32 %v399, %v409
    %v430 = vmul.f32 %v401, %v409
    %v431 = vmul.f32 %v404, %v409
    %v432 = vld [vmem:[%s3] sm:$0x1]
    %v434 = vperm.slane %v432, 0
    %v436 = vadd.f32 %v411, %v434
    %v437 = vadd.f32 %v412, %v434
    %v438 = vadd.f32 %v413, %v434
    %v439 = vadd.f32 %v414, %v434
    %v440 = vadd.f32 %v415, %v434
    %v441 = vadd.f32 %v416, %v434
    %v442 = vadd.f32 %v417, %v434
    %v443 = vadd.f32 %v418, %v434
    %v444 = vadd.f32 %v419, %v434
    %v445 = vadd.f32 %v420, %v434
    %v446 = vadd.f32 %v421, %v434
    %v447 = vadd.f32 %v422, %v434
    %v448 = vadd.f32 %v423, %v434
    %v449 = vadd.f32 %v424, %v434
    %v450 = vadd.f32 %v425, %v434
    %v451 = vadd.f32 %v426, %v434
    %v452 = vadd.f32 %v427, %v434
    %v453 = vadd.f32 %v428, %v434
    %v454 = vadd.f32 %v429, %v434
    %v455 = vadd.f32 %v430, %v434
    %v456 = vadd.f32 %v431, %v434
    %vm457 = vcmask 64512
    %458 = vst.msk [vmem:[%s4] sm:$0xff] %vm457, %v436
    %459 = vst.msk [vmem:[%s4 + $0x8] sm:$0xff] %vm457, %v437
    %460 = vst.msk [vmem:[%s4 + $0x10] sm:$0xff] %vm457, %v438
    %461 = vst.msk [vmem:[%s4 + $0x18] sm:$0xff] %vm457, %v439
    %462 = vst.msk [vmem:[%s4 + $0x20] sm:$0xff] %vm457, %v440
    %463 = vst.msk [vmem:[%s4 + $0x28] sm:$0xff] %vm457, %v441
    %464 = vst.msk [vmem:[%s4 + $0x30] sm:$0xff] %vm457, %v442
    %465 = vst.msk [vmem:[%s4 + $0x38] sm:$0xff] %vm457, %v443
    %466 = vst.msk [vmem:[%s4 + $0x40] sm:$0xff] %vm457, %v444
    %467 = vst.msk [vmem:[%s4 + $0x48] sm:$0xff] %vm457, %v445
    %468 = vst.msk [vmem:[%s4 + $0x50] sm:$0xff] %vm457, %v446
    %469 = vst.msk [vmem:[%s4 + $0x58] sm:$0xff] %vm457, %v447
    %470 = vst.msk [vmem:[%s4 + $0x60] sm:$0xff] %vm457, %v448
    %471 = vst.msk [vmem:[%s4 + $0x68] sm:$0xff] %vm457, %v449
    %472 = vst.msk [vmem:[%s4 + $0x70] sm:$0xff] %vm457, %v450
    %473 = vst.msk [vmem:[%s4 + $0x78] sm:$0xff] %vm457, %v451
    %474 = vst.msk [vmem:[%s4 + $0x80] sm:$0xff] %vm457, %v452
    %475 = vst.msk [vmem:[%s4 + $0x88] sm:$0xff] %vm457, %v453
    %476 = vst.msk [vmem:[%s4 + $0x90] sm:$0xff] %vm457, %v454
    %477 = vst.msk [vmem:[%s4 + $0x98] sm:$0xff] %vm457, %v455
    %vm478 = vcmask 58368
    %479 = vst.msk [vmem:[%s4 + $0xa0] sm:$0x3] %vm478, %v456
    // Predicated region
    $region22: #{tpu_custom_call.1} parent=1 // pred_check
      _
    $region23: #{tpu_custom_call.1} parent=1 // pred_check_branch
      %481 = sbr.rel (0) target = $region25
    $region24: #{tpu_custom_call.1} parent=1 // pred_region
      _
    $region25: #{tpu_custom_call.1} parent=1 // pred_fallthru
      _
    // Predicated region
    $region26: #{tpu_custom_call.1} parent=1 // pred_check
      _
    $region27: #{tpu_custom_call.1} parent=1 // pred_check_branch
      %483 = sbr.rel (0) target = $region29
    $region28: #{tpu_custom_call.1} parent=1 // pred_region
      _
    $region29: #{tpu_custom_call.1} parent=1 // pred_fallthru
      _
    %484 = vsyncpa [#allocation3], 1

</llo_original>
